<compile_context>
chip_gen: v5e
topology: v5e:2x2
jax: 0.10.0
libtpu: 0.0.40
codegen_flags: <defaults>
</compile_context>

<pallas_src>
import functools

import jax
import jax.numpy as jnp
import numpy as np
from jax.experimental import pallas as pl
from jax.experimental.pallas import tpu as pltpu

LN_EPS = 1e-5  # PyTorch nn.LayerNorm default


def _layernorm(h, gamma, beta):
    mu = jnp.mean(h, axis=-1, keepdims=True)
    var = jnp.mean((h - mu) ** 2, axis=-1, keepdims=True)
    return (h - mu) * jax.lax.rsqrt(var + LN_EPS) * gamma + beta


# --------------------- kernel 1: fused Q/K/V projection ----------------------
def qkv_proj_kernel(x_ref, wqkv_ref, q_ref, k_ref, v_ref):
    cd = wqkv_ref.dtype
    x = x_ref[0].astype(cd)                                        # (tl, D)
    qkv = jnp.dot(x, wqkv_ref[...], preferred_element_type=jnp.float32)
    D = q_ref.shape[-1]
    q_ref[0] = qkv[:, 0:D].astype(q_ref.dtype)
    k_ref[0] = qkv[:, D:2 * D].astype(k_ref.dtype)
    v_ref[0] = qkv[:, 2 * D:3 * D].astype(v_ref.dtype)


def _qkv_projection(x, wqkv, tl):
    B, L, D = x.shape
    cd = wqkv.dtype
    csize = jnp.dtype(cd).itemsize
    xsize = jnp.dtype(x.dtype).itemsize
    need = (3 * D * D * csize                               # single-buffered weight
            + 2 * tl * D * (xsize + 3 * csize))             # double-buffered x + q/k/v
    vmem_limit = int(min(max(2 * need + (4 << 20), 16 << 20), 64 << 20))

    grid_spec = pltpu.PrefetchScalarGridSpec(
        num_scalar_prefetch=0,
        grid=(B, L // tl),
        in_specs=[
            pl.BlockSpec((1, tl, D), lambda b, i: (b, i, 0)),
            pl.BlockSpec((D, 3 * D), lambda b, i: (0, 0),
                         pipeline_mode=pl.Buffered(1)),       # weight never changes
        ],
        out_specs=[pl.BlockSpec((1, tl, D), lambda b, i: (b, i, 0))] * 3,
    )
    return pl.pallas_call(
        qkv_proj_kernel,
        out_shape=tuple(jax.ShapeDtypeStruct((B, L, D), cd) for _ in range(3)),
        grid_spec=grid_spec,
        compiler_params=pltpu.CompilerParams(
            dimension_semantics=("parallel", "parallel"),
            vmem_limit_bytes=vmem_limit),
    )(x, wqkv)


# ------------- kernel 2: flash attention + out-proj + LN + FFN + LN ----------
def attn_block_kernel(x_ref, q_ref, k_ref, v_ref, wo_ref, g1_ref, b1_ref,
                      w1_ref, bf1_ref, w2_ref, bf2_ref, g2_ref, b2_ref,
                      out_ref, m_scr, l_scr, acc_scr, *, n_heads, ff_tile):
    kv = pl.program_id(2)
    H = n_heads
    tq, D = q_ref.shape[1], q_ref.shape[2]
    tk = k_ref.shape[1]
    hd = D // H
    cd = wo_ref.dtype

    @pl.when(kv == 0)
    def _():
        m_scr[...] = jnp.full_like(m_scr, -jnp.inf)
        l_scr[...] = jnp.zeros_like(l_scr)
        acc_scr[...] = jnp.zeros_like(acc_scr)

    # Head relayout is per-tile (tq/tk rows), not on the whole sequence.
    qh = q_ref[0].astype(cd).reshape(tq, H, hd).transpose(1, 0, 2)   # (H, tq, hd)
    kh = k_ref[0].astype(cd).reshape(tk, H, hd).transpose(1, 0, 2)
    vh = v_ref[0].astype(cd).reshape(tk, H, hd).transpose(1, 0, 2)

    # q is pre-scaled by 1/sqrt(hd) (folded into Wq): no score scaling here.
    s = jnp.einsum('hqd,hkd->hqk', qh, kh,
                   preferred_element_type=jnp.float32)               # (H, tq, tk) f32
    m_prev = m_scr[...]
    m_new = jnp.maximum(m_prev, jnp.max(s, axis=-1, keepdims=True))
    alpha = jnp.exp(m_prev - m_new)
    p = jnp.exp(s - m_new)                                           # unnormalized probs
    l_scr[...] = alpha * l_scr[...] + jnp.sum(p, axis=-1, keepdims=True)
    acc_scr[...] = alpha * acc_scr[...] + jnp.einsum(
        'hqk,hkd->hqd', p.astype(cd), vh, preferred_element_type=jnp.float32)
    m_scr[...] = m_new

    @pl.when(kv == pl.num_programs(2) - 1)
    def _():
        # Normalize after the PV matmul: (H,tq,hd) elements, not (H,tq,tk).
        l = l_scr[...]
        inv_l = pl.reciprocal(l, approx=True)        # EUP slot
        inv_l = inv_l * (2.0 - l * inv_l)            # one Newton step (keeps f32 accuracy)
        attn = (acc_scr[...] * inv_l).transpose(1, 0, 2).reshape(tq, D)

        x = x_ref[0].astype(jnp.float32)             # (tq, D) residual input
        mha = jnp.dot(attn.astype(cd), wo_ref[...],
                      preferred_element_type=jnp.float32)
        # (attention / output dropout: identity in eval mode)
        y = _layernorm(x + mha, g1_ref[...], b1_ref[...])

        # FeedForward, tiled over the 4*D hidden dim (never materializes (tq, 4D)
        # when ff_tile < 4D).  Dropout = identity.
        y_cd = y.astype(cd)
        FF = w1_ref.shape[-1]
        ff_acc = jnp.zeros((tq, D), jnp.float32)
        for c in range(0, FF, ff_tile):
            h = jnp.dot(y_cd, w1_ref[:, c:c + ff_tile],
                        preferred_element_type=jnp.float32) + bf1_ref[:, c:c + ff_tile]
            h = jnp.maximum(h, 0.0)
            ff_acc = ff_acc + jnp.dot(h.astype(cd), w2_ref[c:c + ff_tile, :],
                                      preferred_element_type=jnp.float32)
        ff = ff_acc + bf2_ref[...]

        out = _layernorm(y + ff, g2_ref[...], b2_ref[...])
        out_ref[0] = out.astype(out_ref.dtype)


# ------------------------------- wrappers ------------------------------------
def prepare_params(params, n_heads, matmul_dtype=jnp.bfloat16):
    """One-time weight prep (hoisted out of the per-call path):
    Q/K/V fusion, 1/sqrt(hd) folding into Wq, casts to the matmul dtype."""
    (wq, wk, wv, wo, g1, b1, w1, bf1, w2, bf2, g2, b2) = params
    D = wq.shape[0]
    assert D % n_heads == 0
    hd = D // n_heads
    inv_scale = 1.0 / (float(hd) ** 0.5)
    wqkv = jnp.concatenate([wq * inv_scale, wk, wv], axis=1).astype(matmul_dtype)
    return dict(
        n_heads=n_heads,
        wqkv=wqkv,
        wo=wo.astype(matmul_dtype),
        g1=g1, b1=b1,
        w1=w1.astype(matmul_dtype), bf1=bf1,
        w2=w2.astype(matmul_dtype), bf2=bf2,
        g2=g2, b2=b2,
    )


def encoder_layer(x, prep, *, tq=256, tk=256, ff_tile=512):
    """x: (B, L, D); prep: output of prepare_params()."""
    B, L, D = x.shape
    H = prep["n_heads"]
    hd = D // H
    wqkv, wo = prep["wqkv"], prep["wo"]
    g1, b1, g2, b2 = prep["g1"], prep["b1"], prep["g2"], prep["b2"]
    w1, bf1, w2, bf2 = prep["w1"], prep["bf1"], prep["w2"], prep["bf2"]
    FF = w1.shape[-1]
    cd = wqkv.dtype

    tq = min(tq, L)
    tk = min(tk, L)
    tl = min(256, L)
    assert L % tq == 0 and L % tk == 0 and L % tl == 0, "L must divide tile sizes"
    ff_tile = FF if (FF <= ff_tile or FF % ff_tile) else ff_tile

    # TODO(synk): pad D / hd to lane-dense multiples of 128 (with masked LayerNorm
    # statistics) when the model dims are not already 128-aligned.

    # Kernel 1: fused QKV projection (q pre-scaled via the weights).
    q, k, v = _qkv_projection(x, wqkv, tl)

    # VMEM budget sized from the actual block + scratch footprint.
    csize = jnp.dtype(cd).itemsize
    xsize = jnp.dtype(x.dtype).itemsize
    weight_bytes = (D * D + D * FF + FF * D) * csize + (6 * D + FF) * 4     # single-buffered
    io_bytes = 2 * (tq * D * (xsize + csize) + 2 * tk * D * csize) + 2 * tq * D * xsize
    scratch_bytes = (2 * H * tq + H * tq * hd) * 4
    work_bytes = (H * tq * tk + tq * ff_tile + 2 * tq * D) * 4              # transient f32
    need = weight_bytes + io_bytes + scratch_bytes + work_bytes
    vmem_limit = int(min(max(2 * need + (4 << 20), 16 << 20), 64 << 20))

    def const_spec(shape):   # weights / biases: constant index map -> single buffer
        return pl.BlockSpec(shape, lambda b, qi, ki: (0,) * len(shape),
                            pipeline_mode=pl.Buffered(1))

    in_specs = [
        pl.BlockSpec((1, tq, D), lambda b, qi, ki: (b, qi, 0)),   # x (residual)
        pl.BlockSpec((1, tq, D), lambda b, qi, ki: (b, qi, 0)),   # q
        pl.BlockSpec((1, tk, D), lambda b, qi, ki: (b, ki, 0)),   # k
        pl.BlockSpec((1, tk, D), lambda b, qi, ki: (b, ki, 0)),   # v
        const_spec((D, D)),                                       # Wo^T
        const_spec((1, D)), const_spec((1, D)),                   # ln1 gamma / beta
        const_spec((D, FF)), const_spec((1, FF)),                 # ffn W1^T, b1
        const_spec((FF, D)), const_spec((1, D)),                  # ffn W2^T, b2
        const_spec((1, D)), const_spec((1, D)),                   # ln2 gamma / beta
    ]

    kernel = functools.partial(attn_block_kernel, n_heads=H, ff_tile=ff_tile)
    return pl.pallas_call(
        kernel,
        out_shape=jax.ShapeDtypeStruct((B, L, D), x.dtype),
        grid_spec=pltpu.PrefetchScalarGridSpec(
            num_scalar_prefetch=0,
            grid=(B, L // tq, L // tk),
            in_specs=in_specs,
            out_specs=pl.BlockSpec((1, tq, D), lambda b, qi, ki: (b, qi, 0)),
            scratch_shapes=[
                pltpu.VMEM((H, tq, 1), jnp.float32),    # running max m
                pltpu.VMEM((H, tq, 1), jnp.float32),    # running denom l
                pltpu.VMEM((H, tq, hd), jnp.float32),   # unnormalized PV accumulator
            ]),
        compiler_params=pltpu.CompilerParams(
            dimension_semantics=("parallel", "parallel", "arbitrary"),
            vmem_limit_bytes=vmem_limit),
    )(x, q, k, v, wo, g1, b1, w1, bf1, w2, bf2, g2, b2)


# ---------------------- pure-JAX reference (correctness) ---------------------
def ref_encoder_layer(x, params, n_heads):
    (wq, wk, wv, wo, g1, b1, w1, bf1, w2, bf2, g2, b2) = params
    B, L, D = x.shape
    hd = D // n_heads
    q = x @ wq
    k = x @ wk
    v = x @ wv
    qh = q.reshape(B, L, n_heads, hd).transpose(0, 2, 1, 3)
    kh = k.reshape(B, L, n_heads, hd).transpose(0, 2, 1, 3)
    vh = v.reshape(B, L, n_heads, hd).transpose(0, 2, 1, 3)
    s = jnp.einsum("bhid,bhjd->bhij", qh, kh) / (hd ** 0.5)
    p = jax.nn.softmax(s, axis=-1)
    o = jnp.einsum("bhij,bhjd->bhid", p, vh)
    o = o.transpose(0, 2, 1, 3).reshape(B, L, D) @ wo

    def ln(h, g, b):
        mu = jnp.mean(h, axis=-1, keepdims=True)
        var = jnp.mean((h - mu) ** 2, axis=-1, keepdims=True)
        return (h - mu) / jnp.sqrt(var + LN_EPS) * g + b

    y = ln(x + o, g1, b1)
    ff = jnp.maximum(y @ w1 + bf1, 0.0) @ w2 + bf2
    return ln(y + ff, g2, b2)


if __name__ == "__main__":
    B, L, D, H = 2, 8, 32, 4
    FF = 4 * D
    key = jax.random.PRNGKey(0)
    ks = jax.random.split(key, 12)

    x = jax.random.normal(ks[0], (B, L, D), jnp.float32)

    # Deterministic parameter init (shapes from the module __init__).
    # Linear weights stored pre-transposed: (in_dim, out_dim).
    wq = jax.random.normal(ks[1], (D, D), jnp.float32) * 0.1
    wk = jax.random.normal(ks[2], (D, D), jnp.float32) * 0.1
    wv = jax.random.normal(ks[3], (D, D), jnp.float32) * 0.1
    wo = jax.random.normal(ks[4], (D, D), jnp.float32) * 0.1
    g1 = jnp.ones((1, D), jnp.float32)
    b1 = jnp.zeros((1, D), jnp.float32)
    w1 = jax.random.normal(ks[5], (D, FF), jnp.float32) * 0.1
    bf1 = jax.random.normal(ks[6], (1, FF), jnp.float32) * 0.1
    w2 = jax.random.normal(ks[7], (FF, D), jnp.float32) * 0.1
    bf2 = jax.random.normal(ks[8], (1, D), jnp.float32) * 0.1
    g2 = jnp.ones((1, D), jnp.float32)
    b2 = jnp.zeros((1, D), jnp.float32)

    params = (wq, wk, wv, wo, g1, b1, w1, bf1, w2, bf2, g2, b2)
    ref = ref_encoder_layer(x, params, n_heads=H)

    # f32 matmul path: tight check against the pure-JAX reference
    # (tolerance accounts for the EUP approx-reciprocal + Newton refinement).
    prep_f32 = prepare_params(params, n_heads=H, matmul_dtype=jnp.float32)
    out = jax.block_until_ready(encoder_layer(x, prep_f32))
    np.testing.assert_allclose(np.asarray(out), np.asarray(ref),
                               rtol=5e-4, atol=5e-4)

    # bf16 matmul path (default, full MXU rate): run + loose sanity check.
    prep_bf16 = prepare_params(params, n_heads=H)
    out_bf16 = jax.block_until_ready(encoder_layer(x, prep_bf16))
    assert bool(jnp.all(jnp.isfinite(out_bf16)))
    assert float(jnp.max(jnp.abs(out_bf16 - ref))) < 0.1

    print("KERNEL_OK")
</pallas_src>

<mosaic_0001>
module attributes {stable_mosaic.version = 11 : i64} {
  func.func @qkv_proj_kernel(%arg0: i32, %arg1: i32, %arg2: memref<1x8x32xf32, #tpu.memory_space<vmem>>, %arg3: memref<32x96xf32, #tpu.memory_space<vmem>>, %arg4: memref<1x8x32xf32, #tpu.memory_space<vmem>>, %arg5: memref<1x8x32xf32, #tpu.memory_space<vmem>>, %arg6: memref<1x8x32xf32, #tpu.memory_space<vmem>>) attributes {dimension_semantics = [#tpu.dimension_semantics<parallel>, #tpu.dimension_semantics<parallel>], iteration_bounds = array<i64: 2, 1>, scalar_prefetch = 0 : i64, scratch_operands = 0 : i64, tpu.core_type = #tpu.core_type<tc>, window_params = [{transform_indices = @transform_0, window_bounds = array<i64: 1, 8, 32>}, {pipeline_mode = #tpu.pipeline_mode<synchronous>, transform_indices = @transform_1, window_bounds = array<i64: 32, 96>}, {transform_indices = @transform_2, window_bounds = array<i64: 1, 8, 32>}, {transform_indices = @transform_3, window_bounds = array<i64: 1, 8, 32>}, {transform_indices = @transform_4, window_bounds = array<i64: 1, 8, 32>}]} {
    %c0 = arith.constant 0 : index
    %c0_0 = arith.constant 0 : index
    %c0_1 = arith.constant 0 : index
    %0 = vector.load %arg2[%c0, %c0_0, %c0_1] : memref<1x8x32xf32, #tpu.memory_space<vmem>>, vector<1x8x32xf32>
    %1 = vector.shape_cast %0 : vector<1x8x32xf32> to vector<8x32xf32>
    %c0_2 = arith.constant 0 : index
    %c0_3 = arith.constant 0 : index
    %2 = vector.load %arg3[%c0_2, %c0_3] : memref<32x96xf32, #tpu.memory_space<vmem>>, vector<32x96xf32>
    %cst = arith.constant dense<0.000000e+00> : vector<8x96xf32>
    %3 = tpu.matmul %1, %2, %cst {dimension_numbers = #tpu.dot_dimension_numbers<[1], [0], [0], [1], [0, 0, 1, 1], [], []>} : vector<8x32xf32>, vector<32x96xf32>, vector<8x96xf32> -> vector<8x96xf32>
    %4 = vector.extract_strided_slice %3 {offsets = [0, 0], sizes = [8, 32], strides = [1, 1]} : vector<8x96xf32> to vector<8x32xf32>
    %c0_4 = arith.constant 0 : index
    %c0_5 = arith.constant 0 : index
    %c0_6 = arith.constant 0 : index
    %5 = vector.load %arg4[%c0_4, %c0_5, %c0_6] : memref<1x8x32xf32, #tpu.memory_space<vmem>>, vector<1x8x32xf32>
    %6 = vector.shape_cast %5 : vector<1x8x32xf32> to vector<8x32xf32>
    %7 = vector.shape_cast %4 : vector<8x32xf32> to vector<1x8x32xf32>
    tpu.vector_store %arg4[%c0_4, %c0_5, %c0_6], %7 {strides = array<i32>} : memref<1x8x32xf32, #tpu.memory_space<vmem>>, vector<1x8x32xf32>,
    %8 = vector.extract_strided_slice %3 {offsets = [0, 32], sizes = [8, 32], strides = [1, 1]} : vector<8x96xf32> to vector<8x32xf32>
    %c0_7 = arith.constant 0 : index
    %c0_8 = arith.constant 0 : index
    %c0_9 = arith.constant 0 : index
    %9 = vector.load %arg5[%c0_7, %c0_8, %c0_9] : memref<1x8x32xf32, #tpu.memory_space<vmem>>, vector<1x8x32xf32>
    %10 = vector.shape_cast %9 : vector<1x8x32xf32> to vector<8x32xf32>
    %11 = vector.shape_cast %8 : vector<8x32xf32> to vector<1x8x32xf32>
    tpu.vector_store %arg5[%c0_7, %c0_8, %c0_9], %11 {strides = array<i32>} : memref<1x8x32xf32, #tpu.memory_space<vmem>>, vector<1x8x32xf32>,
    %12 = vector.extract_strided_slice %3 {offsets = [0, 64], sizes = [8, 32], strides = [1, 1]} : vector<8x96xf32> to vector<8x32xf32>
    %c0_10 = arith.constant 0 : index
    %c0_11 = arith.constant 0 : index
    %c0_12 = arith.constant 0 : index
    %13 = vector.load %arg6[%c0_10, %c0_11, %c0_12] : memref<1x8x32xf32, #tpu.memory_space<vmem>>, vector<1x8x32xf32>
    %14 = vector.shape_cast %13 : vector<1x8x32xf32> to vector<8x32xf32>
    %15 = vector.shape_cast %12 : vector<8x32xf32> to vector<1x8x32xf32>
    tpu.vector_store %arg6[%c0_10, %c0_11, %c0_12], %15 {strides = array<i32>} : memref<1x8x32xf32, #tpu.memory_space<vmem>>, vector<1x8x32xf32>,
    return
  }
  func.func @transform_0(%arg0: i32, %arg1: i32) -> (i32, i32, i32) {
    %c0_i32 = arith.constant 0 : i32
    %c0_i32_0 = arith.constant 0 : i32
    return %arg0, %arg1, %c0_i32 : i32, i32, i32
  }
  func.func @transform_1(%arg0: i32, %arg1: i32) -> (i32, i32) {
    %c0_i32 = arith.constant 0 : i32
    %c0_i32_0 = arith.constant 0 : i32
    %c0_i32_1 = arith.constant 0 : i32
    return %c0_i32, %c0_i32_0 : i32, i32
  }
  func.func @transform_2(%arg0: i32, %arg1: i32) -> (i32, i32, i32) {
    %c0_i32 = arith.constant 0 : i32
    %c0_i32_0 = arith.constant 0 : i32
    return %arg0, %arg1, %c0_i32 : i32, i32, i32
  }
  func.func @transform_3(%arg0: i32, %arg1: i32) -> (i32, i32, i32) {
    %c0_i32 = arith.constant 0 : i32
    %c0_i32_0 = arith.constant 0 : i32
    return %arg0, %arg1, %c0_i32 : i32, i32, i32
  }
  func.func @transform_4(%arg0: i32, %arg1: i32) -> (i32, i32, i32) {
    %c0_i32 = arith.constant 0 : i32
    %c0_i32_0 = arith.constant 0 : i32
    return %arg0, %arg1, %c0_i32 : i32, i32, i32
  }
}

</mosaic_0001>

<llo_original>
// kernel: tpu_custom_call.1
$region0: #{tpu_custom_call.1}
  #allocation0 [shape = 'u32[]', space=smem, size = 0x4, offset = 0x4, fixed_abs, tag = 'smem constant byte address 0x4 - core index']
  #allocation1 [shape = 'u32[72,128]{1,0:T(1,128)}', space=vmem, size = 0x9000, scoped, tag = 'internal scratch']
  %s0 = inlined_call_operand.hbm [shape: f32[2,8,32], index: 0, kind: input, shape index: {}]
  %s1 = inlined_call_operand.hbm [shape: f32[32,96], index: 1, kind: input, shape index: {}]
  %s2 = inlined_call_operand.hbm [shape: f32[2,8,32], index: 2, kind: output, shape index: {0}]
  %s3 = inlined_call_operand.hbm [shape: f32[2,8,32], index: 3, kind: output, shape index: {1}]
  %s4 = inlined_call_operand.hbm [shape: f32[2,8,32], index: 4, kind: output, shape index: {2}]
  %5 = xla_tuple %s2, %s3, %s4
  %s6 = sld [smem:[#allocation0]]
  $region65: #{tpu_custom_call.1} parent=0
    _
  %s8 = ssub.s32 1, %s6
  %s9 = scalar_select 0, %s8, %s6
  $region1: #{tpu_custom_call.1} parent=0
    #allocation2 [shape = 'u8[8192]{0}', space=vmem, size = 0x2000, scoped, tag = 'input window, operand 0']
    #allocation3 [shape = 's32[2]{0}', space=sflag, size = 0x8, scoped, tag = 'scoped memory for tpu_custom_call.1']
    #allocation4 [shape = 's32[2]{0}', space=sflag, size = 0x8, scoped, tag = 'scoped memory for tpu_custom_call.1']
    #allocation5 [shape = 'u8[16384]{0}', space=vmem, size = 0x4000, scoped, tag = 'input window, operand 1, single buffered']
    #allocation6 [shape = 's32[1]{0}', space=sflag, size = 0x4, scoped, tag = 'scoped memory for tpu_custom_call.1']
    #allocation7 [shape = 'u8[8192]{0}', space=vmem, size = 0x2000, scoped, tag = 'output window, operand 0']
    #allocation8 [shape = 'u8[8192]{0}', space=vmem, size = 0x2000, scoped, tag = 'output window, operand 1']
    #allocation9 [shape = 's32[2]{0}', space=sflag, size = 0x8, scoped, tag = 'scoped memory for tpu_custom_call.1']
    #allocation10 [shape = 'u8[8192]{0}', space=vmem, size = 0x2000, scoped, tag = 'output window, operand 2']
    %10 = vsyncpa [#allocation3], 0
    %s11 = scalar_lea.sflag [#allocation3], 1
    %12 = vsyncpa %s11, 0
    %13 = vsyncpa [#allocation6], 0
    %14 = vsyncpa [#allocation4], 0
    %s15 = scalar_lea.sflag [#allocation4], 1
    %16 = vsyncpa %s15, 0
    %17 = vsyncpa [#allocation9], 0
    %s18 = scalar_lea.sflag [#allocation9], 1
    %19 = vsyncpa %s18, 0
    loop: start=0, step=1, limit=4
    $region2: #{tpu_custom_call.1} parent=1 // loop_pre_header
      _
    $region3: #{tpu_custom_call.1} parent=1 // loop_header
      %s21 = sphi 0, %s25
      %p22 = scmp.ge.s32.totalorder %s21, 4
      %s28 = sphi 0, %s40
      %s29 = sphi 0, %s36
      %s30 = sphi 0, %s28
      %s31 = sphi 0, %s29
      %s32 = sphi 0, %s30
      %s33 = sphi 0, %s31
      %s45 = sphi 0, %s47
      %s48 = sphi 0, %s45
      %s49 = sphi 0, %s48
      %s65 = sphi 0, %s49
      %s69 = sphi 0, %s69
      %s71 = sphi 0, %s69
      %s72 = sphi 0, %s71
      %s86 = sphi 0, %s72
      %s94 = sphi 0, %s96
      %s97 = sphi 0, %s94
      %s98 = sphi 0, %s97
      %s114 = sphi 0, %s98
      %s122 = sphi 0, %s124
      %s125 = sphi 0, %s122
      %s126 = sphi 0, %s125
      %s142 = sphi 0, %s126
      %s150 = sphi 0, %s152
      %s153 = sphi 0, %s150
      %s154 = sphi 0, %s153
      %s170 = sphi 0, %s154
    $region4: #{tpu_custom_call.1} parent=1 // loop_header_branch
      %24 = sbr.rel (%p22) target = $region8
    $region5: #{tpu_custom_call.1} parent=1 // loop_body
      %s26 = ssub.s32 %s21, 1
      %s27 = ssub.s32 %s21, 2
      %s34 = sadd.s32 1, %s29
      %p35 = scmp.ge.s32.totalorder %s34, 1
      %s36 = scalar_select %p35, 0, %s34
      %s37 = sadd.s32 1, %s28
      %s38 = scalar_select %p35, %s37, %s28
      %p39 = scmp.ge.s32.totalorder %s38, 2
      %s40 = scalar_select %p39, 0, %s38
      %s41 = ssub.s32 %s28, %s40
      %s42 = ssub.s32 %s29, %s36
      %s43 = sor.u32 %s41, %s42
      %p44 = scmp.eq.s32.totalorder %s43, 0
      %s46 = sadd.s32 %s45, 1
      %s47 = scalar_select %p44, %s45, %s46
      %p50 = pneg %p44
      %p51 = scmp.eq.s32.totalorder %s21, 1
      %p52 = por %p50, %p51
      %p53 = scmp.ne.s32.totalorder %s45, %s48
      %p54 = scmp.eq.s32.totalorder %s21, 0
      %p55 = por %p53, %p54
      %p56 = scmp.ne.s32.totalorder %s45, %s48
      %p57 = scmp.eq.s32.totalorder %s26, 1
      %p58 = por %p56, %p57
      %p59 = scmp.ne.s32.totalorder %s48, %s49
      %p60 = scmp.eq.s32.totalorder %s26, 0
      %p61 = por %p59, %p60
      %p62 = scmp.ne.s32.totalorder %s48, %s49
      %p63 = scmp.eq.s32.totalorder %s27, 1
      %p64 = por %p62, %p63
      %p66 = scmp.ne.s32.totalorder %s49, %s65
      %p67 = scmp.eq.s32.totalorder %s27, 0
      %p68 = por %p66, %p67
      %s70 = sadd.s32 %s69, 1
      %p73 = scmp.eq.s32.totalorder %s21, 1
      %p74 = scmp.ne.s32.totalorder %s69, %s71
      %p75 = scmp.eq.s32.totalorder %s21, 0
      %p76 = por %p74, %p75
      %p77 = scmp.ne.s32.totalorder %s69, %s71
      %p78 = scmp.eq.s32.totalorder %s26, 1
      %p79 = por %p77, %p78
      %p80 = scmp.ne.s32.totalorder %s71, %s72
      %p81 = scmp.eq.s32.totalorder %s26, 0
      %p82 = por %p80, %p81
      %p83 = scmp.ne.s32.totalorder %s71, %s72
      %p84 = scmp.eq.s32.totalorder %s27, 1
      %p85 = por %p83, %p84
      %p87 = scmp.ne.s32.totalorder %s72, %s86
      %p88 = scmp.eq.s32.totalorder %s27, 0
      %p89 = por %p87, %p88
      %s90 = ssub.s32 %s28, %s40
      %s91 = ssub.s32 %s29, %s36
      %s92 = sor.u32 %s90, %s91
      %p93 = scmp.eq.s32.totalorder %s92, 0
      %s95 = sadd.s32 %s94, 1
      %s96 = scalar_select %p93, %s94, %s95
      %p99 = pneg %p93
      %p100 = scmp.eq.s32.totalorder %s21, 1
      %p101 = por %p99, %p100
      %p102 = scmp.ne.s32.totalorder %s94, %s97
      %p103 = scmp.eq.s32.totalorder %s21, 0
      %p104 = por %p102, %p103
      %p105 = scmp.ne.s32.totalorder %s94, %s97
      %p106 = scmp.eq.s32.totalorder %s26, 1
      %p107 = por %p105, %p106
      %p108 = scmp.ne.s32.totalorder %s97, %s98
      %p109 = scmp.eq.s32.totalorder %s26, 0
      %p110 = por %p108, %p109
      %p111 = scmp.ne.s32.totalorder %s97, %s98
      %p112 = scmp.eq.s32.totalorder %s27, 1
      %p113 = por %p111, %p112
      %p115 = scmp.ne.s32.totalorder %s98, %s114
      %p116 = scmp.eq.s32.totalorder %s27, 0
      %p117 = por %p115, %p116
      %s118 = ssub.s32 %s28, %s40
      %s119 = ssub.s32 %s29, %s36
      %s120 = sor.u32 %s118, %s119
      %p121 = scmp.eq.s32.totalorder %s120, 0
      %s123 = sadd.s32 %s122, 1
      %s124 = scalar_select %p121, %s122, %s123
      %p127 = pneg %p121
      %p128 = scmp.eq.s32.totalorder %s21, 1
      %p129 = por %p127, %p128
      %p130 = scmp.ne.s32.totalorder %s122, %s125
      %p131 = scmp.eq.s32.totalorder %s21, 0
      %p132 = por %p130, %p131
      %p133 = scmp.ne.s32.totalorder %s122, %s125
      %p134 = scmp.eq.s32.totalorder %s26, 1
      %p135 = por %p133, %p134
      %p136 = scmp.ne.s32.totalorder %s125, %s126
      %p137 = scmp.eq.s32.totalorder %s26, 0
      %p138 = por %p136, %p137
      %p139 = scmp.ne.s32.totalorder %s125, %s126
      %p140 = scmp.eq.s32.totalorder %s27, 1
      %p141 = por %p139, %p140
      %p143 = scmp.ne.s32.totalorder %s126, %s142
      %p144 = scmp.eq.s32.totalorder %s27, 0
      %p145 = por %p143, %p144
      %s146 = ssub.s32 %s28, %s40
      %s147 = ssub.s32 %s29, %s36
      %s148 = sor.u32 %s146, %s147
      %p149 = scmp.eq.s32.totalorder %s148, 0
      %s151 = sadd.s32 %s150, 1
      %s152 = scalar_select %p149, %s150, %s151
      %p155 = pneg %p149
      %p156 = scmp.eq.s32.totalorder %s21, 1
      %p157 = por %p155, %p156
      %p158 = scmp.ne.s32.totalorder %s150, %s153
      %p159 = scmp.eq.s32.totalorder %s21, 0
      %p160 = por %p158, %p159
      %p161 = scmp.ne.s32.totalorder %s150, %s153
      %p162 = scmp.eq.s32.totalorder %s26, 1
      %p163 = por %p161, %p162
      %p164 = scmp.ne.s32.totalorder %s153, %s154
      %p165 = scmp.eq.s32.totalorder %s26, 0
      %p166 = por %p164, %p165
      %p167 = scmp.ne.s32.totalorder %s153, %s154
      %p168 = scmp.eq.s32.totalorder %s27, 1
      %p169 = por %p167, %p168
      %p171 = scmp.ne.s32.totalorder %s154, %s170
      %p172 = scmp.eq.s32.totalorder %s27, 0
      %p173 = por %p171, %p172
      %p174 = scmp.le.s32.totalorder 1, %s21
      %p175 = scmp.lt.s32.totalorder %s21, 3
      %p176 = pnand %p174, %p175
      %p177 = pneg %p176
      // Predicated region
      $region9: #{tpu_custom_call.1} parent=5 // pred_check
        _
      $region10: #{tpu_custom_call.1} parent=5 // pred_check_branch
        %179 = sbr.rel (%p176) target = $region12
      $region11: #{tpu_custom_call.1} parent=5 // pred_region
        %s180 = ssub.s32 %s21, 1
        // Predicated region
        $region13: #{tpu_custom_call.1} parent=11 // pred_check
          %p181 = pneg %p82
        $region14: #{tpu_custom_call.1} parent=11 // pred_check_branch
          %183 = sbr.rel (%p181) target = $region16
        $region15: #{tpu_custom_call.1} parent=11 // pred_region
          %185 = vsyncadd [#allocation6], 0
          %s186 = sshll.u32 %s1, 4
          %s187 = int_to_ptr.hbm [resolvable:$true] %s186
          %s188 = sshll.u32 [#allocation5], 4
          %s189 = int_to_ptr.vmem [resolvable:$true] %s188
          %194 = dma.hbm_to_vmem [thread:$0]  %s187, 512, %s189, [#allocation6], 128, 128, 8
        $region16: #{tpu_custom_call.1} parent=11 // pred_fallthru
          _
      $region12: #{tpu_custom_call.1} parent=5 // pred_fallthru
        _
      %p195 = scmp.lt.s32.totalorder %s21, 2
      // Predicated region
      $region17: #{tpu_custom_call.1} parent=5 // pred_check
        %p196 = pneg %p195
      $region18: #{tpu_custom_call.1} parent=5 // pred_check_branch
        %198 = sbr.rel (%p196) target = $region20
      $region19: #{tpu_custom_call.1} parent=5 // pred_region
        // Predicated region
        $region21: #{tpu_custom_call.1} parent=19 // pred_check
          %p199 = pneg %p55
        $region22: #{tpu_custom_call.1} parent=19 // pred_check_branch
          %201 = sbr.rel (%p199) target = $region24
        $region23: #{tpu_custom_call.1} parent=19 // pred_region
          %s202 = sand.u32 %s45, 1
          %s203 = scalar_lea.sflag [#allocation3], %s202
          %s204 = sand.u32 %s45, 1
          %s205 = smul.addr %s204, 8
          %s206 = scalar_lea.vmem [#allocation2], %s205
          %208 = vsyncadd %s203, 0
          %s209 = sadd.s32 %s29, %s28
          %s210 = smul.addr %s209, 8
          %s211 = scalar_lea.hbm %s0, %s210
          %s213 = sshll.u32 %s211, 4
          %s214 = int_to_ptr.hbm [resolvable:$true] %s213
          %s215 = sshll.u32 %s206, 4
          %s216 = int_to_ptr.vmem [resolvable:$true] %s215
          %218 = dma.hbm_to_vmem [thread:$0]  %s214, 128, %s216, %s203
        $region24: #{tpu_custom_call.1} parent=19 // pred_fallthru
          _
      $region20: #{tpu_custom_call.1} parent=5 // pred_fallthru
        _
      %p219 = scmp.le.s32.totalorder 1, %s21
      %p220 = scmp.lt.s32.totalorder %s21, 3
      %p221 = pnand %p219, %p220
      %p222 = pneg %p221
      // Predicated region
      $region25: #{tpu_custom_call.1} parent=5 // pred_check
        _
      $region26: #{tpu_custom_call.1} parent=5 // pred_check_branch
        %224 = sbr.rel (%p221) target = $region28
      $region27: #{tpu_custom_call.1} parent=5 // pred_region
        %s225 = ssub.s32 %s21, 1
        %s226 = sand.u32 %s48, 1
        %s227 = scalar_lea.sflag [#allocation3], %s226
        %s228 = sand.u32 %s48, 1
        %s229 = smul.addr %s228, 8
        %s230 = scalar_lea.vmem [#allocation2], %s229
        // Predicated region
        $region29: #{tpu_custom_call.1} parent=27 // pred_check
          %p231 = pneg %p61
        $region30: #{tpu_custom_call.1} parent=27 // pred_check_branch
          %233 = sbr.rel (%p231) target = $region32
        $region31: #{tpu_custom_call.1} parent=27 // pred_region
          %235 = dma.done %s227, 128
        $region32: #{tpu_custom_call.1} parent=27 // pred_fallthru
          _
        // Predicated region
        $region33: #{tpu_custom_call.1} parent=27 // pred_check
          %p236 = pneg %p82
        $region34: #{tpu_custom_call.1} parent=27 // pred_check_branch
          %238 = sbr.rel (%p236) target = $region36
        $region35: #{tpu_custom_call.1} parent=27 // pred_region
          %240 = dma.done [#allocation6], 512
        $region36: #{tpu_custom_call.1} parent=27 // pred_fallthru
          _
        %s241 = sand.u32 %s48, 1
        %s242 = scalar_lea.sflag [#allocation3], %s241
        %s243 = sand.u32 %s48, 1
        %s244 = smul.addr %s243, 8
        %s245 = scalar_lea.vmem [#allocation2], %s244
        %p246 = pneg %p61
        %p247 = pneg %p58
        %p248 = pneg %p82
        %p249 = pneg %p79
        %p250 = pneg %p110
        %p251 = pneg %p107
        %s252 = sand.u32 %s97, 1
        %s253 = scalar_lea.sflag [#allocation4], %s252
        %s254 = sand.u32 %s97, 1
        %s255 = smul.addr %s254, 8
        %s256 = scalar_lea.vmem [#allocation7], %s255
        %p257 = pneg %p138
        %p258 = pneg %p135
        %s259 = sand.u32 %s26, 1
        %s260 = scalar_lea.sflag [#allocation9], %s259
        %s261 = sand.u32 %s125, 1
        %s262 = smul.addr %s261, 8
        %s263 = scalar_lea.vmem [#allocation8], %s262
        %p264 = pneg %p166
        %p265 = pneg %p163
        %s266 = sand.u32 %s26, 1
        %s267 = scalar_lea.sflag [#allocation9], %s266
        %s268 = sand.u32 %s153, 1
        %s269 = smul.addr %s268, 8
        %s270 = scalar_lea.vmem [#allocation10], %s269
        %v271 = vld [vmem:[%s230] sm:$0xff]
        %v272 = vld [vmem:[#allocation5] sm:$0xff]
        %v273 = vld [vmem:[#allocation5 + $0x8] sm:$0xff]
        %v274 = vld [vmem:[#allocation5 + $0x10] sm:$0xff]
        %v275 = vld [vmem:[#allocation5 + $0x18] sm:$0xff]
        %vm276 = vcmask 261120
        %v278 = vsel %vm276, %v271, 0
        %280 = vmatpush.msra.mxu0 0.0
        %281 = vmatpush.msra.mxu0 0.0
        %282 = vmatpush.msra.mxu0 0.0
        %283 = vmatpush.msra.mxu0 0.0
        %284 = vmatpush.msra.mxu0 0.0
        %285 = vmatpush.msra.mxu0 0.0
        %286 = vmatpush.msra.mxu0 0.0
        %287 = vmatpush.msra.mxu0 0.0
        %288 = vmatpush.msra.mxu0 0.0
        %289 = vmatpush.msra.mxu0 0.0
        %290 = vmatpush.msra.mxu0 0.0
        %291 = vmatpush.msra.mxu0 0.0
        %292 = vmatpush.msra.mxu0 %v275
        %293 = vmatpush.msra.mxu0 %v274
        %294 = vmatpush.msra.mxu0 %v273
        %295 = vmatpush.msra.mxu0 %v272
        %296 = vmatmul.f32.gmra.mxu0 %v278
        %v297 = vpop.f32.mrf.mxu0
        %v298 = vadd.f32 0.0, %v297
        %299 = vdwg.mxu0
        %300 = vst.msk [vmem:[%s256] sm:$0xff] %vm276, %v298
        %302 = vrot.lane.b32.xlu0 %v298, 96
        %v303 = vpop.permute.xlu0 %302
        %305 = vst.msk [vmem:[%s263] sm:$0xff] %vm276, %v303
        %306 = vrot.lane.b32.xlu0 %v298, 64
        %v307 = vpop.permute.xlu0 %306
        %309 = vst.msk [vmem:[%s270] sm:$0xff] %vm276, %v307
        %s310 = sand.u32 %s97, 1
        %s311 = scalar_lea.sflag [#allocation4], %s310
        %s312 = sand.u32 %s97, 1
        %s313 = smul.addr %s312, 8
        %s314 = scalar_lea.vmem [#allocation7], %s313
        %s315 = sand.u32 %s26, 1
        %s316 = scalar_lea.sflag [#allocation9], %s315
        %s317 = sand.u32 %s125, 1
        %s318 = smul.addr %s317, 8
        %s319 = scalar_lea.vmem [#allocation8], %s318
        %s320 = sand.u32 %s26, 1
        %s321 = scalar_lea.sflag [#allocation9], %s320
        %s322 = sand.u32 %s153, 1
        %s323 = smul.addr %s322, 8
        %s324 = scalar_lea.vmem [#allocation10], %s323
        // Predicated region
        $region37: #{tpu_custom_call.1} parent=27 // pred_check
          %p325 = pneg %p107
        $region38: #{tpu_custom_call.1} parent=27 // pred_check_branch
          %327 = sbr.rel (%p325) target = $region40
        $region39: #{tpu_custom_call.1} parent=27 // pred_region
          %329 = vsyncadd %s311, 0
          %s330 = sadd.s32 %s31, %s30
          %s331 = smul.addr %s330, 8
          %s332 = scalar_lea.hbm %s2, %s331
          %s334 = sshll.u32 %s314, 4
          %s335 = int_to_ptr.vmem [resolvable:$true] %s334
          %s336 = sshll.u32 %s332, 4
          %s337 = int_to_ptr.hbm [resolvable:$true] %s336
          %339 = dma.vmem_to_hbm [thread:$0]  %s335, 128, %s337, %s311
        $region40: #{tpu_custom_call.1} parent=27 // pred_fallthru
          _
        // Predicated region
        $region41: #{tpu_custom_call.1} parent=27 // pred_check
          %p340 = pneg %p135
        $region42: #{tpu_custom_call.1} parent=27 // pred_check_branch
          %342 = sbr.rel (%p340) target = $region44
        $region43: #{tpu_custom_call.1} parent=27 // pred_region
          %344 = vsyncadd %s316, 0
          %s345 = sadd.s32 %s31, %s30
          %s346 = smul.addr %s345, 8
          %s347 = scalar_lea.hbm %s3, %s346
          %s349 = sshll.u32 %s319, 4
          %s350 = int_to_ptr.vmem [resolvable:$true] %s349
          %s351 = sshll.u32 %s347, 4
          %s352 = int_to_ptr.hbm [resolvable:$true] %s351
          %354 = dma.vmem_to_hbm [thread:$0]  %s350, 128, %s352, %s316
        $region44: #{tpu_custom_call.1} parent=27 // pred_fallthru
          _
        // Predicated region
        $region45: #{tpu_custom_call.1} parent=27 // pred_check
          %p355 = pneg %p163
        $region46: #{tpu_custom_call.1} parent=27 // pred_check_branch
          %357 = sbr.rel (%p355) target = $region48
        $region47: #{tpu_custom_call.1} parent=27 // pred_region
          %359 = vsyncadd %s321, 0
          %s360 = sadd.s32 %s31, %s30
          %s361 = smul.addr %s360, 8
          %s362 = scalar_lea.hbm %s4, %s361
          %s364 = sshll.u32 %s324, 4
          %s365 = int_to_ptr.vmem [resolvable:$true] %s364
          %s366 = sshll.u32 %s362, 4
          %s367 = int_to_ptr.hbm [resolvable:$true] %s366
          %369 = dma.vmem_to_hbm [thread:$0]  %s365, 128, %s367, %s321
        $region48: #{tpu_custom_call.1} parent=27 // pred_fallthru
          _
      $region28: #{tpu_custom_call.1} parent=5 // pred_fallthru
        _
      %p370 = scmp.le.s32.totalorder 2, %s21
      // Predicated region
      $region49: #{tpu_custom_call.1} parent=5 // pred_check
        %p371 = pneg %p370
      $region50: #{tpu_custom_call.1} parent=5 // pred_check_branch
        %373 = sbr.rel (%p371) target = $region52
      $region51: #{tpu_custom_call.1} parent=5 // pred_region
        %s374 = ssub.s32 %s21, 2
        // Predicated region
        $region53: #{tpu_custom_call.1} parent=51 // pred_check
          %p375 = pneg %p113
        $region54: #{tpu_custom_call.1} parent=51 // pred_check_branch
          %377 = sbr.rel (%p375) target = $region56
        $region55: #{tpu_custom_call.1} parent=51 // pred_region
          %s378 = sand.u32 %s98, 1
          %s379 = scalar_lea.sflag [#allocation4], %s378
          %s380 = sand.u32 %s98, 1
          %s381 = smul.addr %s380, 8
          %s382 = scalar_lea.vmem [#allocation7], %s381
          %384 = dma.done %s379, 128
        $region56: #{tpu_custom_call.1} parent=51 // pred_fallthru
          _
        // Predicated region
        $region57: #{tpu_custom_call.1} parent=51 // pred_check
          %p385 = pneg %p141
        $region58: #{tpu_custom_call.1} parent=51 // pred_check_branch
          %387 = sbr.rel (%p385) target = $region60
        $region59: #{tpu_custom_call.1} parent=51 // pred_region
          %s388 = sand.u32 %s27, 1
          %s389 = scalar_lea.sflag [#allocation9], %s388
          %s390 = sand.u32 %s126, 1
          %s391 = smul.addr %s390, 8
          %s392 = scalar_lea.vmem [#allocation8], %s391
          %394 = dma.done %s389, 128
        $region60: #{tpu_custom_call.1} parent=51 // pred_fallthru
          _
        // Predicated region
        $region61: #{tpu_custom_call.1} parent=51 // pred_check
          %p395 = pneg %p169
        $region62: #{tpu_custom_call.1} parent=51 // pred_check_branch
          %397 = sbr.rel (%p395) target = $region64
        $region63: #{tpu_custom_call.1} parent=51 // pred_region
          %s398 = sand.u32 %s27, 1
          %s399 = scalar_lea.sflag [#allocation9], %s398
          %s400 = sand.u32 %s154, 1
          %s401 = smul.addr %s400, 8
          %s402 = scalar_lea.vmem [#allocation10], %s401
          %404 = dma.done %s399, 128
        $region64: #{tpu_custom_call.1} parent=51 // pred_fallthru
          _
      $region52: #{tpu_custom_call.1} parent=5 // pred_fallthru
        _
    $region6: #{tpu_custom_call.1} parent=1 // loop_footer
      %s25 = sadd.s32 1, %s21
    $region7: #{tpu_custom_call.1} parent=1 // loop_footer_branch
      %20 = sbr.rel target = $region3
    $region8: #{tpu_custom_call.1} parent=1 // loop_exit
      _
    %405 = vsyncpa [#allocation3], 1
    %s406 = scalar_lea.sflag [#allocation3], 1
    %407 = vsyncpa %s406, 1
    %408 = vsyncpa [#allocation6], 1
    %409 = vsyncpa [#allocation4], 1
    %s410 = scalar_lea.sflag [#allocation4], 1
    %411 = vsyncpa %s410, 1
    %412 = vsyncpa [#allocation9], 1
    %s413 = scalar_lea.sflag [#allocation9], 1
    %414 = vsyncpa %s413, 1

</llo_original>
